<compile_context>
chip_gen: v5e
topology: v5e:2x2
jax: 0.10.0
libtpu: 0.0.40
codegen_flags: <defaults>
</compile_context>

<pallas_src>
from typing import List, Optional, Tuple, Union

import jax
import jax.numpy as jnp
from jax.experimental import pallas as pl
from jax.experimental.pallas import tpu as pltpu


def _hbm_copy_kernel(re_in, im_in, re_out, im_out):
    """Whole-slab HBM->HBM DMA copy of the (real, imag) spectrum planes."""

    def body(sem_re, sem_im):
        cp_re = pltpu.make_async_copy(re_in, re_out, sem_re)
        cp_im = pltpu.make_async_copy(im_in, im_out, sem_im)
        # Start both DMAs first so the two planes stream concurrently.
        cp_re.start()
        cp_im.start()
        cp_re.wait()
        cp_im.wait()

    pl.run_scoped(
        body,
        pltpu.SemaphoreType.DMA(()),
        pltpu.SemaphoreType.DMA(()),
    )


def _pallas_copy(x_re: jax.Array, x_im: jax.Array):
    """Materialize a distinct copy of (real, imag) via raw HBM->HBM DMA.

    The arrays are flattened to a contiguous 2-D slab (free reshape) and each
    plane is moved with a single DMA: no VMEM staging, no grid, no per-step
    overhead.  Use only when the caller truly needs a distinct buffer; the
    default forward path returns the inputs unchanged.
    """
    shape = x_re.shape
    cols = shape[-1]
    rows = 1
    for d in shape[:-1]:
        rows *= d

    re2d = x_re.reshape(rows, cols)   # contiguous reshape: free
    im2d = x_im.reshape(rows, cols)

    any_spec = pl.BlockSpec(memory_space=pl.ANY)
    out_shape = (
        jax.ShapeDtypeStruct((rows, cols), x_re.dtype),
        jax.ShapeDtypeStruct((rows, cols), x_im.dtype),
    )

    # Pure mem-bound copy: read + write of both planes.
    bytes_accessed = 2 * (
        re2d.size * re2d.dtype.itemsize + im2d.size * im2d.dtype.itemsize
    )

    h_re, h_im = pl.pallas_call(
        _hbm_copy_kernel,
        in_specs=[any_spec, any_spec],
        out_specs=(any_spec, any_spec),
        out_shape=out_shape,
        cost_estimate=pl.CostEstimate(
            flops=0, transcendentals=0, bytes_accessed=bytes_accessed
        ),
    )(re2d, im2d)

    return h_re.reshape(shape), h_im.reshape(shape)


class FrontendPallas:
    """JAX/Pallas port of funasr Frontend (default config: no WPE, no beamformer).

    materialize_copy=False (default, fastest): forward returns the input
    spectrum unchanged, exactly matching the PyTorch module's identity
    behavior with zero HBM traffic.
    materialize_copy=True: forward returns a distinct buffer produced by a
    single HBM->HBM DMA per plane (Pallas kernel).
    """

    def __init__(
        self,
        idim: int,
        use_wpe: bool = False,
        use_dnn_mask_for_wpe: bool = True,
        use_beamformer: bool = False,
        bnmask: int = 2,
        materialize_copy: bool = False,
    ):
        self.idim = idim
        self.use_wpe = use_wpe
        self.use_beamformer = use_beamformer
        self.use_dnn_mask_for_wpe = use_dnn_mask_for_wpe
        self.use_frontend_for_all = bnmask > 2
        self.materialize_copy = materialize_copy
        # No learned parameters exist in the default configuration
        # (wpe / beamformer sub-modules are None).
        assert not self.use_wpe and not self.use_beamformer, (
            "Only the default (pass-through) configuration is implemented."
        )

    def __call__(
        self,
        x_re: jax.Array,
        x_im: jax.Array,
        ilens: Union[jax.Array, List[int]],
    ) -> Tuple[Tuple[jax.Array, jax.Array], jax.Array, Optional[jax.Array]]:
        ilens = jnp.asarray(ilens, dtype=jnp.int32)
        assert x_re.shape[0] == ilens.shape[0], (x_re.shape[0], ilens.shape[0])
        if x_re.ndim not in (3, 4):
            raise ValueError(f"Input dim must be 3 or 4: {x_re.ndim}")

        mask = None
        # use_wpe / use_beamformer are both False in the default config:
        # forward is identity on the complex spectrum.
        if self.materialize_copy:
            h_re, h_im = _pallas_copy(x_re, x_im)
        else:
            h_re, h_im = x_re, x_im   # zero-cost pass-through (matches torch)
        return (h_re, h_im), ilens, mask


if __name__ == "__main__":
    # Small shapes consistent with the module: multichannel STFT-like input
    # (B, T, C, F) with F = idim.
    B, T, C, F = 2, 8, 4, 128
    key = jax.random.PRNGKey(0)
    k_re, k_im, k_re3, k_im3 = jax.random.split(key, 4)
    x_re = jax.random.normal(k_re, (B, T, C, F), dtype=jnp.float32)
    x_im = jax.random.normal(k_im, (B, T, C, F), dtype=jnp.float32)
    ilens = [T, T - 2]

    # --- Pallas kernel path (distinct-buffer copy via HBM->HBM DMA) ---------
    frontend_copy = FrontendPallas(idim=F, materialize_copy=True)
    (h_re, h_im), out_ilens, mask = frontend_copy(x_re, x_im, ilens)
    jax.block_until_ready((h_re, h_im, out_ilens))

    assert h_re.shape == x_re.shape and h_re.dtype == x_re.dtype
    assert h_im.shape == x_im.shape and h_im.dtype == x_im.dtype
    assert bool(jnp.all(h_re == x_re)) and bool(jnp.all(h_im == x_im))
    assert mask is None
    assert out_ilens.dtype == jnp.int32 and out_ilens.shape == (B,)
    assert bool(jnp.all(out_ilens == jnp.asarray(ilens, dtype=jnp.int32)))

    # Also exercise the 3-D (single-channel) kernel path.
    y_re = jax.random.normal(k_re3, (B, T, F), dtype=jnp.float32)
    y_im = jax.random.normal(k_im3, (B, T, F), dtype=jnp.float32)
    (g_re, g_im), out_ilens3, mask3 = frontend_copy(y_re, y_im, ilens)
    jax.block_until_ready((g_re, g_im, out_ilens3))
    assert bool(jnp.all(g_re == y_re)) and bool(jnp.all(g_im == y_im))
    assert mask3 is None

    # --- Default (fastest) path: pure pass-through, no kernel ---------------
    frontend = FrontendPallas(idim=F)
    (p_re, p_im), out_ilens_p, mask_p = frontend(x_re, x_im, ilens)
    jax.block_until_ready((p_re, p_im, out_ilens_p))
    assert p_re is x_re and p_im is x_im          # identity, zero HBM traffic
    assert mask_p is None
    assert bool(jnp.all(out_ilens_p == jnp.asarray(ilens, dtype=jnp.int32)))

    print("KERNEL_OK")
</pallas_src>

<mosaic_0001>
module attributes {stable_mosaic.version = 11 : i64} {
  func.func @_hbm_copy_kernel(%arg0: memref<64x128xf32, #tpu.memory_space<any>>, %arg1: memref<64x128xf32, #tpu.memory_space<any>>, %arg2: memref<64x128xf32, #tpu.memory_space<any>>, %arg3: memref<64x128xf32, #tpu.memory_space<any>>) attributes {dimension_semantics = [], scalar_prefetch = 0 : i64, scratch_operands = 0 : i64, tpu.core_type = #tpu.core_type<tc>} {
    "tpu.region"() ({
      %0 = tpu.sem_alloc : memref<!tpu.dma_semaphore, #tpu.memory_space<semaphore_mem>>
      %1 = tpu.sem_alloc : memref<!tpu.dma_semaphore, #tpu.memory_space<semaphore_mem>>
      tpu.enqueue_dma source(%arg0 : memref<64x128xf32, #tpu.memory_space<any>>) target(%arg2 : memref<64x128xf32, #tpu.memory_space<any>>) target_semaphore(%0 : memref<!tpu.dma_semaphore, #tpu.memory_space<semaphore_mem>>)
      tpu.enqueue_dma source(%arg1 : memref<64x128xf32, #tpu.memory_space<any>>) target(%arg3 : memref<64x128xf32, #tpu.memory_space<any>>) target_semaphore(%1 : memref<!tpu.dma_semaphore, #tpu.memory_space<semaphore_mem>>)
      tpu.wait_dma2 semaphore(%0 : memref<!tpu.dma_semaphore, #tpu.memory_space<semaphore_mem>>) src(%arg0 : memref<64x128xf32, #tpu.memory_space<any>>) dst(%arg2 : memref<64x128xf32, #tpu.memory_space<any>>)
      tpu.wait_dma2 semaphore(%1 : memref<!tpu.dma_semaphore, #tpu.memory_space<semaphore_mem>>) src(%arg1 : memref<64x128xf32, #tpu.memory_space<any>>) dst(%arg3 : memref<64x128xf32, #tpu.memory_space<any>>)
      tpu.yield
    }) : () -> ()
    return
  }
}

</mosaic_0001>

<llo_original>
// kernel: tpu_custom_call.1
$region0: #{tpu_custom_call.1}
  #allocation0 [shape = 'u32[]', space=smem, size = 0x4, offset = 0x4, fixed_abs, tag = 'smem constant byte address 0x4 - core index']
  #allocation1 [shape = 'u32[72,128]{1,0:T(1,128)}', space=vmem, size = 0x9000, scoped, tag = 'internal scratch']
  #allocation4 [shape = 's32[]', space=sflag, size = 0x4, offset = 0, fixed_abs, tag = 'sflag constant byte address 0x0 - dummy sync flag']
  #allocation5 [shape = 'u32[0]{0}', space=smem, size = 0, offset = 0, fixed_abs, tag = 'smem constant byte address 0x0 - null']
  #allocation6 [shape = 's32[]', space=sflag, size = 0x4, offset = 0, fixed_abs, tag = 'sflag constant byte address 0x0 - dummy sync flag']
  #allocation7 [shape = 'u32[0]{0}', space=smem, size = 0, offset = 0, fixed_abs, tag = 'smem constant byte address 0x0 - null']
  %s0 = inlined_call_operand.hbm [shape: f32[64,128], index: 0, kind: input, shape index: {}]
  %s1 = inlined_call_operand.hbm [shape: f32[64,128], index: 1, kind: input, shape index: {}]
  %s2 = inlined_call_operand.hbm [shape: f32[64,128], index: 2, kind: output, shape index: {0}]
  %s3 = inlined_call_operand.hbm [shape: f32[64,128], index: 3, kind: output, shape index: {1}]
  %4 = xla_tuple %s2, %s3
  %s5 = sld [smem:[#allocation0]]
  $region3: #{tpu_custom_call.1} parent=0
    _
  %s7 = ssub.s32 1, %s5
  %s8 = scalar_select 0, %s7, %s5
  $region2: #{tpu_custom_call.1} parent=0
    #allocation2 [shape = 's32[1]{0}', space=sflag, size = 0x4, scoped, tag = 'scoped memory for tpu_custom_call.1']
    #allocation3 [shape = 's32[1]{0}', space=sflag, size = 0x4, scoped, tag = 'scoped memory for tpu_custom_call.1']
    %s10 = sshll.u32 1, 14
    %s11 = sxor.u32 4294967295, %s10
    %s13 = sshll.u32 %s0, 4
    %s14 = int_to_ptr.hbm [resolvable:$true] %s13
    %s15 = sshll.u32 %s2, 4
    %s16 = int_to_ptr.hbm [resolvable:$true] %s15
    %19 = dma.general %s14, 1024, %s16, [#allocation2], [#allocation4], [#allocation5], 0, 0
    %s21 = sshll.u32 1, 14
    %s22 = sxor.u32 4294967295, %s21
    %s24 = sshll.u32 %s1, 4
    %s25 = int_to_ptr.hbm [resolvable:$true] %s24
    %s26 = sshll.u32 %s3, 4
    %s27 = int_to_ptr.hbm [resolvable:$true] %s26
    %30 = dma.general %s25, 1024, %s27, [#allocation3], [#allocation6], [#allocation7], 0, 0
    %s31 = smul.u32 64, 1
    %s32 = sshll.u32 %s31, 4
    %33 = dma.done [#allocation2], %s32
    %s34 = sshll.u32 %s31, 4
    %35 = dma.done [#allocation3], %s34

</llo_original>
